<compile_context>
chip_gen: v7x
topology: tpu7x:2x2x1
jax: 0.10.0
libtpu: 0.0.40
codegen_flags: <defaults>
</compile_context>

<pallas_src>
import functools
import math

import jax
import jax.numpy as jnp
import numpy as np
from jax import lax
from jax.experimental import pallas as pl
from jax.experimental.pallas import tpu as pltpu


_LANE = 128      # lane width
_SUBLANE = 8     # f32 sublane width


def _round_up(x, m):
    return (x + m - 1) // m * m


def _pad_to(x, shape):
    if tuple(x.shape) == tuple(shape):
        return x
    return jnp.pad(x, [(0, s - d) for d, s in zip(x.shape, shape)])


def _choose_block_t(B_pad, C_pad, T, itemsize, target_bytes=2 << 20):
    """Pick the per-step time depth TT (multiple of 8) so the streamed slab plus the
    [B, TT, B] count cube stay around ~2 MiB."""
    per_t_slab = B_pad * C_pad * max(int(itemsize), 4)
    per_t_cube = B_pad * B_pad * 4
    tt = target_bytes // max(per_t_slab + per_t_cube, 1)
    tt = max(8, min(int(tt), 256, _round_up(T, 8)))
    return (tt // 8) * 8


def _seq_cb_ce_kernel(preds_ref, lab_col_ref, lab_row_ref, same_ref, seqlen_ref,
                      out_ref, *, beta, batch_size):
    """One grid step = TT consecutive timesteps; writes this block's partial loss."""
    B_pad, TT, C_pad = preds_ref.shape
    log_beta = math.log(beta)
    t0 = pl.program_id(0) * TT

    same = same_ref[...]                                            # [B_pad, B_pad] 0/1 f32
    seqlen = seqlen_ref[...]                                        # [B_pad, 1] i32 (-1 = pad row)
    gsize_row = jnp.sum(same, axis=1, keepdims=True)                # |group(b)|  [B_pad, 1]

    lab_col = lab_col_ref[...]                                      # [B_pad, TT] i32
    lab_row = lab_row_ref[...]                                      # [TT, B_pad] i32

    # valid-timestep mask: global t < seqlen[b]  (also zero for padded rows)
    t_idx = lax.broadcasted_iota(jnp.int32, (1, TT), 1) + t0        # [1, TT]
    pad = (t_idx < seqlen).astype(jnp.float32)                      # [B_pad, TT]

    # own-label log-prob over the whole block: one dense pass over the streamed slab
    c_iota = lax.broadcasted_iota(jnp.int32, (1, 1, C_pad), 2)
    onehot = lab_col[:, :, None] == c_iota                          # [B_pad, TT, C_pad]
    p_sel = jnp.sum(jnp.where(onehot, preds_ref[...], 0.0),
                    axis=2).astype(jnp.float32)                     # [B_pad, TT]

    # count of each row's own label inside its own group, all timesteps at once
    # TODO(synk): for very large batches chunk this [B, TT, B] cube over b'.
    eq = lab_col[:, :, None] == lab_row[None, :, :]                 # [B_pad, TT, B_pad]
    cnt = jnp.sum(jnp.where(eq, same[:, None, :], 0.0), axis=2)     # [B_pad, TT] (>= 1)

    # class-balanced weight of the own label, masked to valid timesteps
    w = (1.0 - beta) / (1.0 - jnp.exp(cnt * log_beta) + 1e-8)       # [B_pad, TT]
    wm = w * pad

    # per-row denominator = sum of masked weights over the row's own group (MXU)
    den = jnp.dot(same, wm, preferred_element_type=jnp.float32)     # [B_pad, TT]
    den_safe = jnp.where(den > 0.0, den, 1.0)                       # wm>0 => den>0

    contrib = (gsize_row * (1.0 / batch_size)) * wm * (-p_sel) / den_safe
    partial = jnp.sum(contrib)                                      # scalar partial loss

    # lane-dense (8,128) store of the broadcast partial; wrapper reads [0,0].
    out_ref[...] = partial + jnp.zeros(out_ref.shape, jnp.float32)


def seq_cb_cross_entropy(preds, labels, pad_mask, beta=0.99, block_t=None):
    """preds: [B, T, C] log-probs, labels: [B, T] int, pad_mask: [B, T] -> scalar loss."""
    B, T, C = preds.shape
    B_pad = _round_up(B, _SUBLANE)
    C_pad = _round_up(C, _LANE)
    if block_t is None:
        block_t = _choose_block_t(B_pad, C_pad, T, jnp.dtype(preds.dtype).itemsize)
    TT = int(block_t)
    assert TT % _SUBLANE == 0 and TT >= _SUBLANE
    T_pad = _round_up(T, TT)
    nblk = T_pad // TT

    preds_p = _pad_to(preds, (B_pad, T_pad, C_pad))
    labels_p = _pad_to(labels.astype(jnp.int32), (B_pad, T_pad))

    # tiny group bookkeeping done once in the wrapper (cheap XLA ops)
    seqlen = jnp.sum(pad_mask, axis=-1).astype(jnp.int32).reshape(B, 1)
    seqlen_p = jnp.pad(seqlen, ((0, B_pad - B), (0, 0)), constant_values=-1)   # pad rows never match
    same = (seqlen_p == seqlen_p.T).astype(jnp.float32)                        # [B_pad, B_pad]

    # two tiny label layouts (big preds tensor untouched)
    lab_col = labels_p.reshape(B_pad, nblk, TT).transpose(1, 0, 2)             # [nblk, B_pad, TT]
    lab_row = labels_p.T                                                       # [T_pad, B_pad]

    kernel = functools.partial(_seq_cb_ce_kernel, beta=float(beta), batch_size=float(B))

    blk_bytes = B_pad * TT * C_pad * 4
    cube_bytes = B_pad * TT * B_pad * 4
    resident_bytes = B_pad * B_pad * 4 + B_pad * 4 + 4 * B_pad * TT * 4
    vmem_limit = int(min(48 << 20, max(16 << 20,
                                       4 * blk_bytes + 3 * cube_bytes
                                       + resident_bytes + (4 << 20))))

    # TODO(synk): on v7x an explicit core_map split of the time blocks could be added;
    # here the "parallel" grid axis with independent per-block outputs already allows it.
    out = pl.pallas_call(
        kernel,
        out_shape=jax.ShapeDtypeStruct((nblk, _SUBLANE, _LANE), jnp.float32),
        grid_spec=pltpu.PrefetchScalarGridSpec(
            num_scalar_prefetch=0,
            grid=(nblk,),
            in_specs=[
                pl.BlockSpec((B_pad, TT, C_pad), lambda i: (0, i, 0)),   # streamed log-prob slab
                pl.BlockSpec((None, B_pad, TT), lambda i: (i, 0, 0)),    # labels, column layout
                pl.BlockSpec((TT, B_pad), lambda i: (i, 0)),             # labels, row layout
                pl.BlockSpec((B_pad, B_pad), lambda i: (0, 0)),          # same-group matrix (resident)
                pl.BlockSpec((B_pad, 1), lambda i: (0, 0)),              # sequence lengths (resident)
            ],
            out_specs=pl.BlockSpec((None, _SUBLANE, _LANE), lambda i: (i, 0, 0)),
        ),
        compiler_params=pltpu.CompilerParams(
            dimension_semantics=("parallel",),       # no carried state -> order independent
            vmem_limit_bytes=vmem_limit,
        ),
    )(preds_p, lab_col, lab_row, same, seqlen_p)

    return jnp.sum(out[:, 0, 0])


def _reference_loss(preds, labels, pad_mask, beta=0.99):
    """Direct numpy transcription of the PyTorch forward (for verification)."""
    preds = np.asarray(preds, dtype=np.float64)
    labels = np.asarray(labels)
    pad_mask = np.asarray(pad_mask)
    B, T, C = preds.shape
    seqlen = pad_mask.sum(-1).astype(np.int64)
    loss = 0.0
    for L in np.unique(seqlen):
        if L == 0:
            continue
        idx = seqlen == L
        ep = preds[idx]       # [Be, T, C]
        el = labels[idx]      # [Be, T]
        Be = el.shape[0]
        bins = np.zeros((T, C), dtype=np.float64)
        for t in range(T):
            for b in range(Be):
                bins[t, el[b, t]] += 1.0
        weight = (1.0 - beta) / (1.0 - beta ** bins + 1e-8)
        for t in range(int(L)):
            w = weight[t][el[:, t]]
            x = ep[np.arange(Be), t, el[:, t]]
            nll = -(w * x).sum() / w.sum()
            loss += (Be / B) * nll
    return loss


if __name__ == "__main__":
    key = jax.random.PRNGKey(0)
    B, T, C = 5, 12, 20           # exercises B->8, C->128 padding
    k1, k2, k3 = jax.random.split(key, 3)

    logits = jax.random.normal(k1, (B, T, C), dtype=jnp.float32)
    preds = jax.nn.log_softmax(logits, axis=-1)                  # nll_loss expects log-probs
    labels = jax.random.randint(k2, (B, T), 0, C, dtype=jnp.int32)
    lengths = jax.random.randint(k3, (B,), 1, T + 1, dtype=jnp.int32)
    pad_mask = (jnp.arange(T)[None, :] < lengths[:, None]).astype(jnp.float32)

    ref = _reference_loss(np.asarray(preds), np.asarray(labels), np.asarray(pad_mask),
                          beta=0.99)

    # forced small time block -> 2 grid steps (multi-block partial-sum path)
    loss_blk = seq_cb_cross_entropy(preds, labels, pad_mask, beta=0.99, block_t=8)
    loss_blk = jax.block_until_ready(loss_blk)
    np.testing.assert_allclose(float(loss_blk), float(ref), rtol=5e-4, atol=1e-4)

    # auto-sized time block (single grid step at these shapes)
    loss_auto = seq_cb_cross_entropy(preds, labels, pad_mask, beta=0.99)
    loss_auto = jax.block_until_ready(loss_auto)
    np.testing.assert_allclose(float(loss_auto), float(ref), rtol=5e-4, atol=1e-4)

    print("KERNEL_OK")
</pallas_src>

<mosaic_0001>
module attributes {stable_mosaic.version = 11 : i64} {
  func.func @_seq_cb_ce_kernel(%arg0: i32, %arg1: memref<8x8x128xf32, #tpu.memory_space<vmem>>, %arg2: memref<1x8x8xi32, #tpu.memory_space<vmem>>, %arg3: memref<8x8xi32, #tpu.memory_space<vmem>>, %arg4: memref<8x8xf32, #tpu.memory_space<vmem>>, %arg5: memref<8x1xi32, #tpu.memory_space<vmem>>, %arg6: memref<1x8x128xf32, #tpu.memory_space<vmem>>) attributes {dimension_semantics = [#tpu.dimension_semantics<parallel>], iteration_bounds = array<i64: 2>, scalar_prefetch = 0 : i64, scratch_operands = 0 : i64, tpu.core_type = #tpu.core_type<tc>, window_params = [{transform_indices = @transform_0, window_bounds = array<i64: 8, 8, 128>}, {transform_indices = @transform_1, window_bounds = array<i64: 1, 8, 8>}, {transform_indices = @transform_2, window_bounds = array<i64: 8, 8>}, {pipeline_mode = #tpu.pipeline_mode<synchronous>, transform_indices = @transform_3, window_bounds = array<i64: 8, 8>}, {pipeline_mode = #tpu.pipeline_mode<synchronous>, transform_indices = @transform_4, window_bounds = array<i64: 8, 1>}, {transform_indices = @transform_5, window_bounds = array<i64: 1, 8, 128>}]} {
    %c8_i32 = arith.constant 8 : i32
    %0 = arith.muli %arg0, %c8_i32 : i32
    %c0 = arith.constant 0 : index
    %c0_0 = arith.constant 0 : index
    %1 = vector.load %arg4[%c0, %c0_0] : memref<8x8xf32, #tpu.memory_space<vmem>>, vector<8x8xf32>
    %c0_1 = arith.constant 0 : index
    %c0_2 = arith.constant 0 : index
    %2 = vector.load %arg5[%c0_1, %c0_2] : memref<8x1xi32, #tpu.memory_space<vmem>>, vector<8x1xi32>
    %cst = arith.constant dense<0.000000e+00> : vector<8xf32>
    %3 = vector.multi_reduction <add>, %1, %cst [1] : vector<8x8xf32> to vector<8xf32>
    %4 = vector.shape_cast %3 : vector<8xf32> to vector<8x1xf32>
    %c0_3 = arith.constant 0 : index
    %c0_4 = arith.constant 0 : index
    %c0_5 = arith.constant 0 : index
    %5 = vector.load %arg2[%c0_3, %c0_4, %c0_5] : memref<1x8x8xi32, #tpu.memory_space<vmem>>, vector<1x8x8xi32>
    %6 = vector.shape_cast %5 : vector<1x8x8xi32> to vector<8x8xi32>
    %c0_6 = arith.constant 0 : index
    %c0_7 = arith.constant 0 : index
    %7 = vector.load %arg3[%c0_6, %c0_7] : memref<8x8xi32, #tpu.memory_space<vmem>>, vector<8x8xi32>
    %8 = tpu.iota {dimensions = array<i32: 1>} : vector<1x8xi32>
    %9 = vector.broadcast %0 : i32 to vector<1x8xi32>
    %10 = arith.addi %8, %9 : vector<1x8xi32>
    %11 = vector.broadcast %10 : vector<1x8xi32> to vector<8x8xi32>
    %12 = vector.broadcast %2 : vector<8x1xi32> to vector<8x8xi32>
    %13 = arith.cmpi slt, %11, %12 : vector<8x8xi32>
    %14 = arith.extui %13 : vector<8x8xi1> to vector<8x8xi32>
    %15 = arith.sitofp %14 : vector<8x8xi32> to vector<8x8xf32>
    %16 = tpu.iota {dimensions = array<i32: 2>} : vector<1x1x128xi32>
    %17 = vector.shape_cast %6 : vector<8x8xi32> to vector<8x8x1xi32>
    %18 = vector.broadcast %17 : vector<8x8x1xi32> to vector<8x8x128xi32>
    %19 = vector.broadcast %16 : vector<1x1x128xi32> to vector<8x8x128xi32>
    %20 = arith.cmpi eq, %18, %19 : vector<8x8x128xi32>
    %c0_8 = arith.constant 0 : index
    %c0_9 = arith.constant 0 : index
    %c0_10 = arith.constant 0 : index
    %21 = vector.load %arg1[%c0_8, %c0_9, %c0_10] : memref<8x8x128xf32, #tpu.memory_space<vmem>>, vector<8x8x128xf32>
    %cst_11 = arith.constant 0.000000e+00 : f32
    %22 = vector.broadcast %cst_11 : f32 to vector<8x8x128xf32>
    %23 = arith.select %20, %21, %22 : vector<8x8x128xi1>, vector<8x8x128xf32>
    %cst_12 = arith.constant dense<0.000000e+00> : vector<8x8xf32>
    %24 = vector.multi_reduction <add>, %23, %cst_12 [2] : vector<8x8x128xf32> to vector<8x8xf32>
    %25 = vector.shape_cast %6 : vector<8x8xi32> to vector<8x8x1xi32>
    %26 = vector.shape_cast %7 : vector<8x8xi32> to vector<1x8x8xi32>
    %27 = vector.broadcast %25 : vector<8x8x1xi32> to vector<8x8x8xi32>
    %28 = vector.broadcast %26 : vector<1x8x8xi32> to vector<8x8x8xi32>
    %29 = arith.cmpi eq, %27, %28 : vector<8x8x8xi32>
    %30 = vector.shape_cast %1 : vector<8x8xf32> to vector<8x1x8xf32>
    %cst_13 = arith.constant 0.000000e+00 : f32
    %31 = vector.shape_cast %30 : vector<8x1x8xf32> to vector<8x1x8xf32>
    %32 = vector.broadcast %31 : vector<8x1x8xf32> to vector<8x8x8xf32>
    %33 = vector.broadcast %cst_13 : f32 to vector<8x8x8xf32>
    %34 = arith.select %29, %32, %33 : vector<8x8x8xi1>, vector<8x8x8xf32>
    %cst_14 = arith.constant dense<0.000000e+00> : vector<8x8xf32>
    %35 = vector.multi_reduction <add>, %34, %cst_14 [2] : vector<8x8x8xf32> to vector<8x8xf32>
    %cst_15 = arith.constant -0.0100503359 : f32
    %36 = vector.broadcast %cst_15 : f32 to vector<8x8xf32>
    %37 = arith.mulf %35, %36 : vector<8x8xf32>
    %38 = math.exp %37 : vector<8x8xf32>
    %cst_16 = arith.constant 1.000000e+00 : f32
    %39 = vector.broadcast %cst_16 : f32 to vector<8x8xf32>
    %40 = arith.subf %39, %38 : vector<8x8xf32>
    %cst_17 = arith.constant 9.99999993E-9 : f32
    %41 = vector.broadcast %cst_17 : f32 to vector<8x8xf32>
    %42 = arith.addf %40, %41 : vector<8x8xf32>
    %cst_18 = arith.constant 0.00999999977 : f32
    %43 = vector.broadcast %cst_18 : f32 to vector<8x8xf32>
    %44 = arith.divf %43, %42 : vector<8x8xf32>
    %45 = arith.mulf %44, %15 : vector<8x8xf32>
    %cst_19 = arith.constant dense<0.000000e+00> : vector<8x8xf32>
    %46 = tpu.matmul %1, %45, %cst_19 {dimension_numbers = #tpu.dot_dimension_numbers<[1], [0], [0], [1], [0, 0, 1, 1], [], []>} : vector<8x8xf32>, vector<8x8xf32>, vector<8x8xf32> -> vector<8x8xf32>
    %cst_20 = arith.constant 0.000000e+00 : f32
    %47 = vector.broadcast %cst_20 : f32 to vector<8x8xf32>
    %48 = arith.cmpf ogt, %46, %47 : vector<8x8xf32>
    %cst_21 = arith.constant 1.000000e+00 : f32
    %49 = vector.broadcast %cst_21 : f32 to vector<8x8xf32>
    %50 = arith.select %48, %46, %49 : vector<8x8xi1>, vector<8x8xf32>
    %cst_22 = arith.constant 2.000000e-01 : f32
    %51 = vector.broadcast %cst_22 : f32 to vector<8x1xf32>
    %52 = arith.mulf %4, %51 : vector<8x1xf32>
    %53 = vector.broadcast %52 : vector<8x1xf32> to vector<8x8xf32>
    %54 = arith.mulf %53, %45 : vector<8x8xf32>
    %cst_23 = arith.constant 0.000000e+00 : f32
    %55 = vector.broadcast %cst_23 : f32 to vector<8x8xf32>
    %56 = arith.subf %55, %24 : vector<8x8xf32>
    %57 = arith.mulf %54, %56 : vector<8x8xf32>
    %58 = arith.divf %57, %50 : vector<8x8xf32>
    %59 = vector.shape_cast %58 : vector<8x8xf32> to vector<1x8x8xf32>
    %cst_24 = arith.constant dense<0.000000e+00> : vector<1xf32>
    %60 = vector.multi_reduction <add>, %59, %cst_24 [1, 2] : vector<1x8x8xf32> to vector<1xf32>
    %61 = vector.shape_cast %60 : vector<1xf32> to vector<1x1x1xf32>
    %62 = vector.extract %61[0, 0, 0] : f32 from vector<1x1x1xf32>
    %cst_25 = arith.constant 0.000000e+00 : f32
    %63 = vector.broadcast %cst_25 : f32 to vector<8x128xf32>
    %64 = vector.broadcast %62 : f32 to vector<8x128xf32>
    %65 = arith.addf %64, %63 : vector<8x128xf32>
    %c0_26 = arith.constant 0 : index
    %c0_27 = arith.constant 0 : index
    %c0_28 = arith.constant 0 : index
    %66 = vector.load %arg6[%c0_26, %c0_27, %c0_28] : memref<1x8x128xf32, #tpu.memory_space<vmem>>, vector<1x8x128xf32>
    %67 = vector.shape_cast %66 : vector<1x8x128xf32> to vector<8x128xf32>
    %68 = vector.shape_cast %65 : vector<8x128xf32> to vector<1x8x128xf32>
    tpu.vector_store %arg6[%c0_26, %c0_27, %c0_28], %68 {strides = array<i32>} : memref<1x8x128xf32, #tpu.memory_space<vmem>>, vector<1x8x128xf32>,
    return
  }
  func.func @transform_0(%arg0: i32) -> (i32, i32, i32) {
    %c0_i32 = arith.constant 0 : i32
    %c0_i32_0 = arith.constant 0 : i32
    %c0_i32_1 = arith.constant 0 : i32
    return %c0_i32, %arg0, %c0_i32_0 : i32, i32, i32
  }
  func.func @transform_1(%arg0: i32) -> (i32, i32, i32) {
    %c0_i32 = arith.constant 0 : i32
    %c0_i32_0 = arith.constant 0 : i32
    %c0_i32_1 = arith.constant 0 : i32
    return %arg0, %c0_i32, %c0_i32_0 : i32, i32, i32
  }
  func.func @transform_2(%arg0: i32) -> (i32, i32) {
    %c0_i32 = arith.constant 0 : i32
    %c0_i32_0 = arith.constant 0 : i32
    return %arg0, %c0_i32 : i32, i32
  }
  func.func @transform_3(%arg0: i32) -> (i32, i32) {
    %c0_i32 = arith.constant 0 : i32
    %c0_i32_0 = arith.constant 0 : i32
    %c0_i32_1 = arith.constant 0 : i32
    return %c0_i32, %c0_i32_0 : i32, i32
  }
  func.func @transform_4(%arg0: i32) -> (i32, i32) {
    %c0_i32 = arith.constant 0 : i32
    %c0_i32_0 = arith.constant 0 : i32
    %c0_i32_1 = arith.constant 0 : i32
    return %c0_i32, %c0_i32_0 : i32, i32
  }
  func.func @transform_5(%arg0: i32) -> (i32, i32, i32) {
    %c0_i32 = arith.constant 0 : i32
    %c0_i32_0 = arith.constant 0 : i32
    %c0_i32_1 = arith.constant 0 : i32
    return %arg0, %c0_i32, %c0_i32_0 : i32, i32, i32
  }
}

</mosaic_0001>

<llo_original>
// kernel: tpu_custom_call.1
$region0: #{tpu_custom_call.1}
  #allocation0 [shape = 'u32[]', space=smem, size = 0x4, offset = 0x4, fixed_abs, tag = 'smem constant byte address 0x4 - core index']
  #allocation1 [shape = 'u32[144,128]{1,0:T(1,128)}', space=vmem, size = 0x12000, scoped, tag = 'internal scratch']
  %s0 = inlined_call_operand.hbm [shape: f32[8,16,128], index: 0, kind: input, shape index: {}]
  %s1 = inlined_call_operand.vmem [shape: s32[2,8,8], index: 1, kind: input, shape index: {}]
  %s2 = inlined_call_operand.vmem [shape: s32[16,8], index: 2, kind: input, shape index: {}]
  %s3 = inlined_call_operand.vmem [shape: f32[8,8], index: 3, kind: input, shape index: {}]
  %s4 = inlined_call_operand.vmem [shape: s32[8,1], index: 4, kind: input, shape index: {}]
  %s5 = inlined_call_operand.hbm [shape: f32[2,8,128], index: 5, kind: output, shape index: {}]
  %s6 = sld [smem:[#allocation0]]
  $region57: #{tpu_custom_call.1} parent=0
    _
  %s8 = ssub.s32 1, %s6
  %s9 = scalar_select 0, %s8, %s6
  $region1: #{tpu_custom_call.1} parent=0
    #allocation2 [shape = 'u8[65536]{0}', space=vmem, size = 0x10000, scoped, tag = 'input window, operand 0']
    #allocation3 [shape = 's32[2]{0}', space=sflag, size = 0x8, scoped, tag = 'scoped memory for tpu_custom_call.1']
    #allocation4 [shape = 's32[2]{0}', space=sflag, size = 0x8, scoped, tag = 'scoped memory for tpu_custom_call.1']
    #allocation5 [shape = 'u8[8192]{0}', space=vmem, size = 0x2000, scoped, tag = 'output window, operand 0']
    %10 = vsyncpa [#allocation3], 0
    %s11 = scalar_lea.sflag [#allocation3], 1
    %12 = vsyncpa %s11, 0
    %13 = vsyncpa [#allocation4], 0
    %s14 = scalar_lea.sflag [#allocation4], 1
    %15 = vsyncpa %s14, 0
    loop: start=0, step=1, limit=4
    $region2: #{tpu_custom_call.1} parent=1 // loop_pre_header
      _
    $region3: #{tpu_custom_call.1} parent=1 // loop_header
      %s17 = sphi 0, %s21
      %p18 = scmp.ge.s32.totalorder %s17, 4
      %s27 = sphi 0, %s29
      %s30 = sphi 0, %s27
      %s31 = sphi 0, %s30
      %s47 = sphi 0, %s31
      %s53 = sphi 0, %s55
      %s56 = sphi 0, %s53
      %s57 = sphi 0, %s56
      %s73 = sphi 0, %s57
      %s79 = sphi 0, %s81
      %s82 = sphi 0, %s79
      %s83 = sphi 0, %s82
      %s99 = sphi 0, %s83
      %s103 = sphi 0, %s103
      %s105 = sphi 0, %s103
      %s106 = sphi 0, %s105
      %s120 = sphi 0, %s106
      %s124 = sphi 0, %s124
      %s126 = sphi 0, %s124
      %s127 = sphi 0, %s126
      %s141 = sphi 0, %s127
      %s147 = sphi 0, %s149
      %s150 = sphi 0, %s147
      %s151 = sphi 0, %s150
      %s167 = sphi 0, %s151
    $region4: #{tpu_custom_call.1} parent=1 // loop_header_branch
      %20 = sbr.rel (%p18) target = $region8
    $region5: #{tpu_custom_call.1} parent=1 // loop_body
      %s22 = ssub.s32 %s17, 1
      %s23 = ssub.s32 %s17, 2
      %s24 = sadd.s32 %s17, 1
      %s25 = ssub.s32 %s17, %s24
      %p26 = scmp.eq.s32.totalorder %s25, 0
      %s28 = sadd.s32 %s27, 1
      %s29 = scalar_select %p26, %s27, %s28
      %p32 = pneg %p26
      %p33 = scmp.eq.s32.totalorder %s17, 1
      %p34 = por %p32, %p33
      %p35 = scmp.ne.s32.totalorder %s27, %s30
      %p36 = scmp.eq.s32.totalorder %s17, 0
      %p37 = por %p35, %p36
      %p38 = scmp.ne.s32.totalorder %s27, %s30
      %p39 = scmp.eq.s32.totalorder %s22, 1
      %p40 = por %p38, %p39
      %p41 = scmp.ne.s32.totalorder %s30, %s31
      %p42 = scmp.eq.s32.totalorder %s22, 0
      %p43 = por %p41, %p42
      %p44 = scmp.ne.s32.totalorder %s30, %s31
      %p45 = scmp.eq.s32.totalorder %s23, 1
      %p46 = por %p44, %p45
      %p48 = scmp.ne.s32.totalorder %s31, %s47
      %p49 = scmp.eq.s32.totalorder %s23, 0
      %p50 = por %p48, %p49
      %s51 = ssub.s32 %s17, %s24
      %p52 = scmp.eq.s32.totalorder %s51, 0
      %s54 = sadd.s32 %s53, 1
      %s55 = scalar_select %p52, %s53, %s54
      %p58 = pneg %p52
      %p59 = scmp.eq.s32.totalorder %s17, 1
      %p60 = por %p58, %p59
      %p61 = scmp.ne.s32.totalorder %s53, %s56
      %p62 = scmp.eq.s32.totalorder %s17, 0
      %p63 = por %p61, %p62
      %p64 = scmp.ne.s32.totalorder %s53, %s56
      %p65 = scmp.eq.s32.totalorder %s22, 1
      %p66 = por %p64, %p65
      %p67 = scmp.ne.s32.totalorder %s56, %s57
      %p68 = scmp.eq.s32.totalorder %s22, 0
      %p69 = por %p67, %p68
      %p70 = scmp.ne.s32.totalorder %s56, %s57
      %p71 = scmp.eq.s32.totalorder %s23, 1
      %p72 = por %p70, %p71
      %p74 = scmp.ne.s32.totalorder %s57, %s73
      %p75 = scmp.eq.s32.totalorder %s23, 0
      %p76 = por %p74, %p75
      %s77 = ssub.s32 %s17, %s24
      %p78 = scmp.eq.s32.totalorder %s77, 0
      %s80 = sadd.s32 %s79, 1
      %s81 = scalar_select %p78, %s79, %s80
      %p84 = pneg %p78
      %p85 = scmp.eq.s32.totalorder %s17, 1
      %p86 = por %p84, %p85
      %p87 = scmp.ne.s32.totalorder %s79, %s82
      %p88 = scmp.eq.s32.totalorder %s17, 0
      %p89 = por %p87, %p88
      %p90 = scmp.ne.s32.totalorder %s79, %s82
      %p91 = scmp.eq.s32.totalorder %s22, 1
      %p92 = por %p90, %p91
      %p93 = scmp.ne.s32.totalorder %s82, %s83
      %p94 = scmp.eq.s32.totalorder %s22, 0
      %p95 = por %p93, %p94
      %p96 = scmp.ne.s32.totalorder %s82, %s83
      %p97 = scmp.eq.s32.totalorder %s23, 1
      %p98 = por %p96, %p97
      %p100 = scmp.ne.s32.totalorder %s83, %s99
      %p101 = scmp.eq.s32.totalorder %s23, 0
      %p102 = por %p100, %p101
      %s104 = sadd.s32 %s103, 1
      %p107 = scmp.eq.s32.totalorder %s17, 1
      %p108 = scmp.ne.s32.totalorder %s103, %s105
      %p109 = scmp.eq.s32.totalorder %s17, 0
      %p110 = por %p108, %p109
      %p111 = scmp.ne.s32.totalorder %s103, %s105
      %p112 = scmp.eq.s32.totalorder %s22, 1
      %p113 = por %p111, %p112
      %p114 = scmp.ne.s32.totalorder %s105, %s106
      %p115 = scmp.eq.s32.totalorder %s22, 0
      %p116 = por %p114, %p115
      %p117 = scmp.ne.s32.totalorder %s105, %s106
      %p118 = scmp.eq.s32.totalorder %s23, 1
      %p119 = por %p117, %p118
      %p121 = scmp.ne.s32.totalorder %s106, %s120
      %p122 = scmp.eq.s32.totalorder %s23, 0
      %p123 = por %p121, %p122
      %s125 = sadd.s32 %s124, 1
      %p128 = scmp.eq.s32.totalorder %s17, 1
      %p129 = scmp.ne.s32.totalorder %s124, %s126
      %p130 = scmp.eq.s32.totalorder %s17, 0
      %p131 = por %p129, %p130
      %p132 = scmp.ne.s32.totalorder %s124, %s126
      %p133 = scmp.eq.s32.totalorder %s22, 1
      %p134 = por %p132, %p133
      %p135 = scmp.ne.s32.totalorder %s126, %s127
      %p136 = scmp.eq.s32.totalorder %s22, 0
      %p137 = por %p135, %p136
      %p138 = scmp.ne.s32.totalorder %s126, %s127
      %p139 = scmp.eq.s32.totalorder %s23, 1
      %p140 = por %p138, %p139
      %p142 = scmp.ne.s32.totalorder %s127, %s141
      %p143 = scmp.eq.s32.totalorder %s23, 0
      %p144 = por %p142, %p143
      %s145 = ssub.s32 %s17, %s24
      %p146 = scmp.eq.s32.totalorder %s145, 0
      %s148 = sadd.s32 %s147, 1
      %s149 = scalar_select %p146, %s147, %s148
      %p152 = pneg %p146
      %p153 = scmp.eq.s32.totalorder %s17, 1
      %p154 = por %p152, %p153
      %p155 = scmp.ne.s32.totalorder %s147, %s150
      %p156 = scmp.eq.s32.totalorder %s17, 0
      %p157 = por %p155, %p156
      %p158 = scmp.ne.s32.totalorder %s147, %s150
      %p159 = scmp.eq.s32.totalorder %s22, 1
      %p160 = por %p158, %p159
      %p161 = scmp.ne.s32.totalorder %s150, %s151
      %p162 = scmp.eq.s32.totalorder %s22, 0
      %p163 = por %p161, %p162
      %p164 = scmp.ne.s32.totalorder %s150, %s151
      %p165 = scmp.eq.s32.totalorder %s23, 1
      %p166 = por %p164, %p165
      %p168 = scmp.ne.s32.totalorder %s151, %s167
      %p169 = scmp.eq.s32.totalorder %s23, 0
      %p170 = por %p168, %p169
      %p171 = scmp.le.s32.totalorder 1, %s17
      %p172 = scmp.lt.s32.totalorder %s17, 3
      %p173 = pnand %p171, %p172
      %p174 = pneg %p173
      // Predicated region
      $region9: #{tpu_custom_call.1} parent=5 // pred_check
        _
      $region10: #{tpu_custom_call.1} parent=5 // pred_check_branch
        %176 = sbr.rel (%p173) target = $region12
      $region11: #{tpu_custom_call.1} parent=5 // pred_region
        %s177 = ssub.s32 %s17, 1
        // Predicated region
        $region13: #{tpu_custom_call.1} parent=11 // pred_check
          %p178 = pneg %p116
        $region14: #{tpu_custom_call.1} parent=11 // pred_check_branch
          %180 = sbr.rel (%p178) target = $region16
        $region15: #{tpu_custom_call.1} parent=11 // pred_region
          _
        $region16: #{tpu_custom_call.1} parent=11 // pred_fallthru
          _
        // Predicated region
        $region17: #{tpu_custom_call.1} parent=11 // pred_check
          %p181 = pneg %p137
        $region18: #{tpu_custom_call.1} parent=11 // pred_check_branch
          %183 = sbr.rel (%p181) target = $region20
        $region19: #{tpu_custom_call.1} parent=11 // pred_region
          _
        $region20: #{tpu_custom_call.1} parent=11 // pred_fallthru
          _
      $region12: #{tpu_custom_call.1} parent=5 // pred_fallthru
        _
      %p184 = scmp.lt.s32.totalorder %s17, 2
      // Predicated region
      $region21: #{tpu_custom_call.1} parent=5 // pred_check
        %p185 = pneg %p184
      $region22: #{tpu_custom_call.1} parent=5 // pred_check_branch
        %187 = sbr.rel (%p185) target = $region24
      $region23: #{tpu_custom_call.1} parent=5 // pred_region
        // Predicated region
        $region25: #{tpu_custom_call.1} parent=23 // pred_check
          %p188 = pneg %p37
        $region26: #{tpu_custom_call.1} parent=23 // pred_check_branch
          %190 = sbr.rel (%p188) target = $region28
        $region27: #{tpu_custom_call.1} parent=23 // pred_region
          %s191 = sand.u32 %s27, 1
          %s192 = scalar_lea.sflag [#allocation3], %s191
          %s193 = sand.u32 %s27, 1
          %s194 = smul.addr %s193, 64
          %s195 = scalar_lea.vmem [#allocation2], %s194
          %s197 = ssub.s32 1024, 1024
          %198 = vsyncadd %s192, %s197
          %s199 = smul.addr %s17, 128
          %s200 = scalar_lea.hbm %s0, %s199
          %s201 = sshll.u32 %s195, 4
          %s202 = int_to_ptr.vmem [resolvable:$true] %s201
          %207 = dma.hbm_to_vmem [thread:$0]  %s200, 1024, %s202, %s192, 256, 128, 8
        $region28: #{tpu_custom_call.1} parent=23 // pred_fallthru
          _
        // Predicated region
        $region29: #{tpu_custom_call.1} parent=23 // pred_check
          %p208 = pneg %p63
        $region30: #{tpu_custom_call.1} parent=23 // pred_check_branch
          %210 = sbr.rel (%p208) target = $region32
        $region31: #{tpu_custom_call.1} parent=23 // pred_region
          %p211 = scmp.lt.s32.totalorder %s17, 1
          %s212 = scalar_select %p211, %s17, 1
          %s213 = smul.addr %s212, 8
          %s214 = scalar_lea.vmem %s1, %s213
        $region32: #{tpu_custom_call.1} parent=23 // pred_fallthru
          _
        // Predicated region
        $region33: #{tpu_custom_call.1} parent=23 // pred_check
          %p215 = pneg %p89
        $region34: #{tpu_custom_call.1} parent=23 // pred_check_branch
          %217 = sbr.rel (%p215) target = $region36
        $region35: #{tpu_custom_call.1} parent=23 // pred_region
          %p218 = scmp.lt.s32.totalorder %s17, 1
          %s219 = scalar_select %p218, %s17, 1
          %s220 = smul.addr %s219, 8
          %s221 = scalar_lea.vmem %s2, %s220
        $region36: #{tpu_custom_call.1} parent=23 // pred_fallthru
          _
      $region24: #{tpu_custom_call.1} parent=5 // pred_fallthru
        _
      %p222 = scmp.le.s32.totalorder 1, %s17
      %p223 = scmp.lt.s32.totalorder %s17, 3
      %p224 = pnand %p222, %p223
      %p225 = pneg %p224
      // Predicated region
      $region37: #{tpu_custom_call.1} parent=5 // pred_check
        _
      $region38: #{tpu_custom_call.1} parent=5 // pred_check_branch
        %227 = sbr.rel (%p224) target = $region40
      $region39: #{tpu_custom_call.1} parent=5 // pred_region
        %s228 = ssub.s32 %s17, 1
        %s229 = sand.u32 %s30, 1
        %s230 = scalar_lea.sflag [#allocation3], %s229
        %s231 = sand.u32 %s30, 1
        %s232 = smul.addr %s231, 64
        %s233 = scalar_lea.vmem [#allocation2], %s232
        // Predicated region
        $region41: #{tpu_custom_call.1} parent=39 // pred_check
          %p234 = pneg %p43
        $region42: #{tpu_custom_call.1} parent=39 // pred_check_branch
          %236 = sbr.rel (%p234) target = $region44
        $region43: #{tpu_custom_call.1} parent=39 // pred_region
          %237 = dma.done %s230, 1024
        $region44: #{tpu_custom_call.1} parent=39 // pred_fallthru
          _
        %s238 = sand.u32 %s30, 1
        %s239 = scalar_lea.sflag [#allocation3], %s238
        %s240 = sand.u32 %s30, 1
        %s241 = smul.addr %s240, 64
        %s242 = scalar_lea.vmem [#allocation2], %s241
        %p243 = pneg %p43
        %p244 = pneg %p40
        %p245 = scmp.lt.s32.totalorder %s22, 1
        %s246 = scalar_select %p245, %s22, 1
        %s247 = smul.addr %s246, 8
        %s248 = scalar_lea.vmem %s1, %s247
        %p249 = pneg %p69
        %p250 = pneg %p66
        %p251 = scmp.lt.s32.totalorder %s22, 1
        %s252 = scalar_select %p251, %s22, 1
        %s253 = smul.addr %s252, 8
        %s254 = scalar_lea.vmem %s2, %s253
        %p255 = pneg %p95
        %p256 = pneg %p92
        %p257 = pneg %p116
        %p258 = pneg %p113
        %p259 = pneg %p137
        %p260 = pneg %p134
        %p261 = pneg %p163
        %p262 = pneg %p160
        %s263 = sand.u32 %s150, 1
        %s264 = scalar_lea.sflag [#allocation4], %s263
        %s265 = sand.u32 %s150, 1
        %s266 = smul.addr %s265, 8
        %s267 = scalar_lea.vmem [#allocation5], %s266
        %p268 = scmp.lt.s32.totalorder %s22, 1
        %s269 = scalar_select %p268, %s22, 1
        %s270 = smul.addr %s269, 8
        %s271 = scalar_lea.vmem %s1, %s270
        %p272 = scmp.lt.s32.totalorder %s22, 1
        %s273 = scalar_select %p272, %s22, 1
        %s274 = smul.addr %s273, 8
        %s275 = scalar_lea.vmem %s2, %s274
        %s276 = smul.u32 %s22, 8
        %v277 = vld [vmem:[%s3] sm:$0xff]
        %v278 = vld [vmem:[%s4] sm:$0xff]
        %vm279 = vcmask 64512
        %v280 = vsel %vm279, %v277, 0.0
        %281 = vadd.xlane.f32.xlu0 %v280
        %v282 = vpop.xlane.xlu0 %281
        %v283 = vld [vmem:[%s271] sm:$0xff]
        %v284 = vld [vmem:[%s275] sm:$0xff]
        %v285 = vlaneseq
        %v286 = vand.u32 %v285, 127
        %v287 = vstv %s276
        %v288 = vadd.s32 %v286, %v287
        %289 = vset.pattern.permute.xlu0 0
        %290 = vperm.xlu0 %289, %v278
        %v291 = vpop.permute.xlu0 %290
        %vm292 = vcmp.lt.s32.totalorder %v288, %v291
        %v293 = vsel %vm292, 1, 0
        %v294 = vcvt.s32.f32 %v293
        %v295 = vlaneseq
        %v296 = vshrl.u32 %v295, 7
        %v297 = vsub.s32 0, %v296
        %v298 = vrot.slane %v283, %v297
        %300 = vbcast.lane.b32.xlu0 %v298, 256
        %v301 = vpop.permute.xlu0 %300
        %v302 = vlaneseq
        %v303 = vshrl.u32 %v302, 7
        %v304 = vsub.s32 1, %v303
        %v305 = vrot.slane %v283, %v304
        %307 = vbcast.lane.b32.xlu0 %v305, 256
        %v308 = vpop.permute.xlu0 %307
        %v309 = vlaneseq
        %v310 = vshrl.u32 %v309, 7
        %v311 = vsub.s32 2, %v310
        %v312 = vrot.slane %v283, %v311
        %314 = vbcast.lane.b32.xlu0 %v312, 256
        %v315 = vpop.permute.xlu0 %314
        %v316 = vlaneseq
        %v317 = vshrl.u32 %v316, 7
        %v318 = vsub.s32 3, %v317
        %v319 = vrot.slane %v283, %v318
        %321 = vbcast.lane.b32.xlu0 %v319, 256
        %v322 = vpop.permute.xlu0 %321
        %v323 = vlaneseq
        %v324 = vshrl.u32 %v323, 7
        %v325 = vsub.s32 4, %v324
        %v326 = vrot.slane %v283, %v325
        %328 = vbcast.lane.b32.xlu0 %v326, 256
        %v329 = vpop.permute.xlu0 %328
        %v330 = vlaneseq
        %v331 = vshrl.u32 %v330, 7
        %v332 = vsub.s32 5, %v331
        %v333 = vrot.slane %v283, %v332
        %335 = vbcast.lane.b32.xlu0 %v333, 256
        %v336 = vpop.permute.xlu0 %335
        %v337 = vlaneseq
        %v338 = vshrl.u32 %v337, 7
        %v339 = vsub.s32 6, %v338
        %v340 = vrot.slane %v283, %v339
        %342 = vbcast.lane.b32.xlu0 %v340, 256
        %v343 = vpop.permute.xlu0 %342
        %v344 = vlaneseq
        %v345 = vshrl.u32 %v344, 7
        %v346 = vsub.s32 7, %v345
        %v347 = vrot.slane %v283, %v346
        %349 = vbcast.lane.b32.xlu0 %v347, 256
        %v350 = vpop.permute.xlu0 %349
        %vm351 = vcmp.eq.s32.totalorder %v301, %v286
        %vm352 = vcmp.eq.s32.totalorder %v308, %v286
        %vm353 = vcmp.eq.s32.totalorder %v315, %v286
        %vm354 = vcmp.eq.s32.totalorder %v322, %v286
        %vm355 = vcmp.eq.s32.totalorder %v329, %v286
        %vm356 = vcmp.eq.s32.totalorder %v336, %v286
        %vm357 = vcmp.eq.s32.totalorder %v343, %v286
        %vm358 = vcmp.eq.s32.totalorder %v350, %v286
        %v359 = vld [vmem:[%s233] sm:$0xff]
        %v360 = vld [vmem:[%s233 + $0x8] sm:$0xff]
        %v361 = vld [vmem:[%s233 + $0x10] sm:$0xff]
        %v362 = vld [vmem:[%s233 + $0x18] sm:$0xff]
        %v363 = vld [vmem:[%s233 + $0x20] sm:$0xff]
        %v364 = vld [vmem:[%s233 + $0x28] sm:$0xff]
        %v365 = vld [vmem:[%s233 + $0x30] sm:$0xff]
        %v366 = vld [vmem:[%s233 + $0x38] sm:$0xff]
        %v367 = vsel %vm351, %v359, 0.0
        %v368 = vsel %vm352, %v360, 0.0
        %v369 = vsel %vm353, %v361, 0.0
        %v370 = vsel %vm354, %v362, 0.0
        %v371 = vsel %vm355, %v363, 0.0
        %v372 = vsel %vm356, %v364, 0.0
        %v373 = vsel %vm357, %v365, 0.0
        %v374 = vsel %vm358, %v366, 0.0
        %375 = vadd.xlane.f32.xlu0 %v367
        %v376 = vpop.xlane.xlu0 %375
        %377 = vadd.xlane.f32.xlu0 %v368
        %v378 = vpop.xlane.xlu0 %377
        %379 = vadd.xlane.f32.xlu0 %v369
        %v380 = vpop.xlane.xlu0 %379
        %381 = vadd.xlane.f32.xlu0 %v370
        %v382 = vpop.xlane.xlu0 %381
        %383 = vadd.xlane.f32.xlu0 %v371
        %v384 = vpop.xlane.xlu0 %383
        %385 = vadd.xlane.f32.xlu0 %v372
        %v386 = vpop.xlane.xlu0 %385
        %387 = vadd.xlane.f32.xlu0 %v373
        %v388 = vpop.xlane.xlu0 %387
        %389 = vadd.xlane.f32.xlu0 %v374
        %v390 = vpop.xlane.xlu0 %389
        %vm391 = vcmp.eq.s32.totalorder %v301, %v284
        %vm392 = vcmp.eq.s32.totalorder %v308, %v284
        %vm393 = vcmp.eq.s32.totalorder %v315, %v284
        %vm394 = vcmp.eq.s32.totalorder %v322, %v284
        %vm395 = vcmp.eq.s32.totalorder %v329, %v284
        %vm396 = vcmp.eq.s32.totalorder %v336, %v284
        %vm397 = vcmp.eq.s32.totalorder %v343, %v284
        %vm398 = vcmp.eq.s32.totalorder %v350, %v284
        %v400 = vcombine.high %v277, %v277
        %v402 = vunpack.c.l.s4 1966171168
        %v403 = vunpack.c.0.s8 %v402
        %v404 = vlaneseq
        %v405 = vshrl.u32 %v404, 7
        %v406 = vsub.s32 %v403, %v405
        %v407 = vrot.slane %v277, %v406
        %v409 = vunpack.c.l.s4 1966171168
        %v410 = vunpack.c.0.s8 %v409
        %v411 = vlaneseq
        %v412 = vshrl.u32 %v411, 7
        %v413 = vsub.s32 %v410, %v412
        %v414 = vrot.slane %v400, %v413
        %v415 = vcombine.high %v407, %v407
        %v416 = vcombine.high %v414, %v414
        %v418 = vunpack.c.l.s4 1966171168
        %v419 = vunpack.c.0.s8 %v418
        %v420 = vlaneseq
        %v421 = vshrl.u32 %v420, 7
        %v422 = vsub.s32 %v419, %v421
        %v423 = vrot.slane %v407, %v422
        %v425 = vunpack.c.l.s4 1966171168
        %v426 = vunpack.c.0.s8 %v425
        %v427 = vlaneseq
        %v428 = vshrl.u32 %v427, 7
        %v429 = vsub.s32 %v426, %v428
        %v430 = vrot.slane %v414, %v429
        %v432 = vunpack.c.l.s4 1966171168
        %v433 = vunpack.c.0.s8 %v432
        %v434 = vlaneseq
        %v435 = vshrl.u32 %v434, 7
        %v436 = vsub.s32 %v433, %v435
        %v437 = vrot.slane %v415, %v436
        %v439 = vunpack.c.l.s4 1966171168
        %v440 = vunpack.c.0.s8 %v439
        %v441 = vlaneseq
        %v442 = vshrl.u32 %v441, 7
        %v443 = vsub.s32 %v440, %v442
        %v444 = vrot.slane %v416, %v443
        %v445 = vcombine.high %v423, %v423
        %v446 = vcombine.high %v430, %v430
        %v447 = vcombine.high %v437, %v437
        %v448 = vcombine.high %v444, %v444
        %v449 = vlaneseq
        %v450 = vshrl.u32 %v449, 7
        %v451 = vsub.s32 0, %v450
        %v452 = vrot.slane %v423, %v451
        %v453 = vlaneseq
        %v454 = vshrl.u32 %v453, 7
        %v455 = vsub.s32 0, %v454
        %v456 = vrot.slane %v437, %v455
        %v457 = vlaneseq
        %v458 = vshrl.u32 %v457, 7
        %v459 = vsub.s32 0, %v458
        %v460 = vrot.slane %v445, %v459
        %v461 = vlaneseq
        %v462 = vshrl.u32 %v461, 7
        %v463 = vsub.s32 0, %v462
        %v464 = vrot.slane %v447, %v463
        %v465 = vlaneseq
        %v466 = vshrl.u32 %v465, 7
        %v467 = vsub.s32 0, %v466
        %v468 = vrot.slane %v430, %v467
        %v469 = vlaneseq
        %v470 = vshrl.u32 %v469, 7
        %v471 = vsub.s32 0, %v470
        %v472 = vrot.slane %v444, %v471
        %v473 = vlaneseq
        %v474 = vshrl.u32 %v473, 7
        %v475 = vsub.s32 0, %v474
        %v476 = vrot.slane %v446, %v475
        %v477 = vlaneseq
        %v478 = vshrl.u32 %v477, 7
        %v479 = vsub.s32 0, %v478
        %v480 = vrot.slane %v448, %v479
        %v489 = vsel %vm391, %v452, 0.0
        %v490 = vsel %vm392, %v456, 0.0
        %v491 = vsel %vm393, %v460, 0.0
        %v492 = vsel %vm394, %v464, 0.0
        %v493 = vsel %vm395, %v468, 0.0
        %v494 = vsel %vm396, %v472, 0.0
        %v495 = vsel %vm397, %v476, 0.0
        %v496 = vsel %vm398, %v480, 0.0
        %v497 = vsel %vm279, %v489, 0.0
        %498 = vadd.xlane.f32.xlu0 %v497
        %v499 = vpop.xlane.xlu0 %498
        %v500 = vsel %vm279, %v490, 0.0
        %501 = vadd.xlane.f32.xlu0 %v500
        %v502 = vpop.xlane.xlu0 %501
        %v503 = vsel %vm279, %v491, 0.0
        %504 = vadd.xlane.f32.xlu0 %v503
        %v505 = vpop.xlane.xlu0 %504
        %v506 = vsel %vm279, %v492, 0.0
        %507 = vadd.xlane.f32.xlu0 %v506
        %v508 = vpop.xlane.xlu0 %507
        %v509 = vsel %vm279, %v493, 0.0
        %510 = vadd.xlane.f32.xlu0 %v509
        %v511 = vpop.xlane.xlu0 %510
        %v512 = vsel %vm279, %v494, 0.0
        %513 = vadd.xlane.f32.xlu0 %v512
        %v514 = vpop.xlane.xlu0 %513
        %v515 = vsel %vm279, %v495, 0.0
        %516 = vadd.xlane.f32.xlu0 %v515
        %v517 = vpop.xlane.xlu0 %516
        %v518 = vsel %vm279, %v496, 0.0
        %519 = vadd.xlane.f32.xlu0 %v518
        %v520 = vpop.xlane.xlu0 %519
        %v521 = vmul.f32 %v499, -0.010050336
        %v522 = vmul.f32 %v502, -0.010050336
        %v523 = vmul.f32 %v505, -0.010050336
        %v524 = vmul.f32 %v508, -0.010050336
        %v525 = vmul.f32 %v511, -0.010050336
        %v526 = vmul.f32 %v514, -0.010050336
        %v527 = vmul.f32 %v517, -0.010050336
        %v528 = vmul.f32 %v520, -0.010050336
        %v529 = vmul.f32 %v521, 1.442695
        %v530 = vpow.pop %v529
        %v531 = vmul.f32 %v522, 1.442695
        %v532 = vpow.pop %v531
        %v533 = vmul.f32 %v523, 1.442695
        %v534 = vpow.pop %v533
        %v535 = vmul.f32 %v524, 1.442695
        %v536 = vpow.pop %v535
        %v537 = vmul.f32 %v525, 1.442695
        %v538 = vpow.pop %v537
        %v539 = vmul.f32 %v526, 1.442695
        %v540 = vpow.pop %v539
        %v541 = vmul.f32 %v527, 1.442695
        %v542 = vpow.pop %v541
        %v543 = vmul.f32 %v528, 1.442695
        %v544 = vpow.pop %v543
        %v545 = vsub.f32 1.0, %v530
        %v546 = vsub.f32 1.0, %v532
        %v547 = vsub.f32 1.0, %v534
        %v548 = vsub.f32 1.0, %v536
        %v549 = vsub.f32 1.0, %v538
        %v550 = vsub.f32 1.0, %v540
        %v551 = vsub.f32 1.0, %v542
        %v552 = vsub.f32 1.0, %v544
        %v553 = vadd.f32 %v545, 1e-08
        %v554 = vadd.f32 %v546, 1e-08
        %v555 = vadd.f32 %v547, 1e-08
        %v556 = vadd.f32 %v548, 1e-08
        %v557 = vadd.f32 %v549, 1e-08
        %v558 = vadd.f32 %v550, 1e-08
        %v559 = vadd.f32 %v551, 1e-08
        %v560 = vadd.f32 %v552, 1e-08
        %v561 = vrcp.pop %v553
        %v562 = vmul.f32 0.01, %v561
        %v563 = vrcp.pop %v554
        %v564 = vmul.f32 0.01, %v563
        %v565 = vrcp.pop %v555
        %v566 = vmul.f32 0.01, %v565
        %v567 = vrcp.pop %v556
        %v568 = vmul.f32 0.01, %v567
        %v569 = vrcp.pop %v557
        %v570 = vmul.f32 0.01, %v569
        %v571 = vrcp.pop %v558
        %v572 = vmul.f32 0.01, %v571
        %v573 = vrcp.pop %v559
        %v574 = vmul.f32 0.01, %v573
        %v575 = vrcp.pop %v560
        %v576 = vmul.f32 0.01, %v575
        %v578 = vlaneseq
        %v579 = vshrl.u32 %v578, 7
        %v580 = vsub.s32 0, %v579
        %v581 = vrot.slane %v294, %v580
        %583 = vbcast.lane.b32.xlu0 %v581, 256
        %v584 = vpop.permute.xlu0 %583
        %v585 = vlaneseq
        %v586 = vshrl.u32 %v585, 7
        %v587 = vsub.s32 1, %v586
        %v588 = vrot.slane %v294, %v587
        %590 = vbcast.lane.b32.xlu0 %v588, 256
        %v591 = vpop.permute.xlu0 %590
        %v592 = vlaneseq
        %v593 = vshrl.u32 %v592, 7
        %v594 = vsub.s32 2, %v593
        %v595 = vrot.slane %v294, %v594
        %597 = vbcast.lane.b32.xlu0 %v595, 256
        %v598 = vpop.permute.xlu0 %597
        %v599 = vlaneseq
        %v600 = vshrl.u32 %v599, 7
        %v601 = vsub.s32 3, %v600
        %v602 = vrot.slane %v294, %v601
        %604 = vbcast.lane.b32.xlu0 %v602, 256
        %v605 = vpop.permute.xlu0 %604
        %v606 = vlaneseq
        %v607 = vshrl.u32 %v606, 7
        %v608 = vsub.s32 4, %v607
        %v609 = vrot.slane %v294, %v608
        %611 = vbcast.lane.b32.xlu0 %v609, 256
        %v612 = vpop.permute.xlu0 %611
        %v613 = vlaneseq
        %v614 = vshrl.u32 %v613, 7
        %v615 = vsub.s32 5, %v614
        %v616 = vrot.slane %v294, %v615
        %618 = vbcast.lane.b32.xlu0 %v616, 256
        %v619 = vpop.permute.xlu0 %618
        %v620 = vlaneseq
        %v621 = vshrl.u32 %v620, 7
        %v622 = vsub.s32 6, %v621
        %v623 = vrot.slane %v294, %v622
        %625 = vbcast.lane.b32.xlu0 %v623, 256
        %v626 = vpop.permute.xlu0 %625
        %v627 = vlaneseq
        %v628 = vshrl.u32 %v627, 7
        %v629 = vsub.s32 7, %v628
        %v630 = vrot.slane %v294, %v629
        %632 = vbcast.lane.b32.xlu0 %v630, 256
        %v633 = vpop.permute.xlu0 %632
        %v642 = vmul.f32 %v562, %v584
        %v643 = vmul.f32 %v564, %v591
        %v644 = vmul.f32 %v566, %v598
        %v645 = vmul.f32 %v568, %v605
        %v646 = vmul.f32 %v570, %v612
        %v647 = vmul.f32 %v572, %v619
        %v648 = vmul.f32 %v574, %v626
        %v649 = vmul.f32 %v576, %v633
        %658 = vset.pattern.permute.xlu0 0
        %659 = vperm.xlu0 %658, %v642
        %v660 = vpop.permute.xlu0 %659
        %661 = vset.pattern.permute.xlu0 0
        %662 = vperm.xlu0 %661, %v643
        %v663 = vpop.permute.xlu0 %662
        %664 = vset.pattern.permute.xlu0 0
        %665 = vperm.xlu0 %664, %v644
        %v666 = vpop.permute.xlu0 %665
        %667 = vset.pattern.permute.xlu0 0
        %668 = vperm.xlu0 %667, %v645
        %v669 = vpop.permute.xlu0 %668
        %670 = vset.pattern.permute.xlu0 0
        %671 = vperm.xlu0 %670, %v646
        %v672 = vpop.permute.xlu0 %671
        %673 = vset.pattern.permute.xlu0 0
        %674 = vperm.xlu0 %673, %v647
        %v675 = vpop.permute.xlu0 %674
        %676 = vset.pattern.permute.xlu0 0
        %677 = vperm.xlu0 %676, %v648
        %v678 = vpop.permute.xlu0 %677
        %679 = vset.pattern.permute.xlu0 0
        %680 = vperm.xlu0 %679, %v649
        %v681 = vpop.permute.xlu0 %680
        %v682 = vlaneseq
        %v683 = vshrl.u32 %v682, 7
        %v684 = vsub.s32 %v286, %v683
        %v685 = vrot.slane %v660, %v684
        %v686 = vlaneseq
        %v687 = vshrl.u32 %v686, 7
        %v688 = vsub.s32 %v286, %v687
        %v689 = vrot.slane %v663, %v688
        %v690 = vlaneseq
        %v691 = vshrl.u32 %v690, 7
        %v692 = vsub.s32 %v286, %v691
        %v693 = vrot.slane %v666, %v692
        %v694 = vlaneseq
        %v695 = vshrl.u32 %v694, 7
        %v696 = vsub.s32 %v286, %v695
        %v697 = vrot.slane %v669, %v696
        %v698 = vlaneseq
        %v699 = vshrl.u32 %v698, 7
        %v700 = vsub.s32 %v286, %v699
        %v701 = vrot.slane %v672, %v700
        %v702 = vlaneseq
        %v703 = vshrl.u32 %v702, 7
        %v704 = vsub.s32 %v286, %v703
        %v705 = vrot.slane %v675, %v704
        %v706 = vlaneseq
        %v707 = vshrl.u32 %v706, 7
        %v708 = vsub.s32 %v286, %v707
        %v709 = vrot.slane %v678, %v708
        %v710 = vlaneseq
        %v711 = vshrl.u32 %v710, 7
        %v712 = vsub.s32 %v286, %v711
        %v713 = vrot.slane %v681, %v712
        %vm714 = vcmask 1041409
        %v715 = vsel %vm714, %v689, %v685
        %vm716 = vcmask 1042434
        %v717 = vsel %vm716, %v693, %v715
        %vm718 = vcmask 1043459
        %v719 = vsel %vm718, %v697, %v717
        %vm720 = vcmask 1044484
        %v721 = vsel %vm720, %v701, %v719
        %vm722 = vcmask 1045509
        %v723 = vsel %vm722, %v705, %v721
        %vm724 = vcmask 1046534
        %v725 = vsel %vm724, %v709, %v723
        %vm726 = vcmask 1047559
        %v727 = vsel %vm726, %v713, %v725
        %v729 = vsel %vm279, %v277, 0
        %731 = vmatprep.subr.mxu0 0.0
        %732 = vmatpush1.msra.mxu0 %v727
        %733 = vmatprep.subr.mxu0 0.0
        %734 = vmatpush1.msra.mxu0 0.0
        %735 = vmatprep.subr.mxu0 0.0
        %736 = vmatpush1.msra.mxu0 0.0
        %737 = vmatprep.subr.mxu0 0.0
        %738 = vmatpush1.msra.mxu0 0.0
        %739 = vmatprep.subr.mxu0 0.0
        %740 = vmatpush1.msra.mxu0 0.0
        %741 = vmatprep.subr.mxu0 0.0
        %742 = vmatpush1.msra.mxu0 0.0
        %743 = vmatprep.subr.mxu0 0.0
        %744 = vmatpush1.msra.mxu0 0.0
        %745 = vmatprep.subr.mxu0 0.0
        %746 = vmatpush1.msra.mxu0 0.0
        %747 = vmatprep.subr.mxu0 0.0
        %748 = vmatpush1.msra.mxu0 0.0
        %749 = vmatprep.subr.mxu0 0.0
        %750 = vmatpush1.msra.mxu0 0.0
        %751 = vmatprep.subr.mxu0 0.0
        %752 = vmatpush1.msra.mxu0 0.0
        %753 = vmatprep.subr.mxu0 0.0
        %754 = vmatpush1.msra.mxu0 0.0
        %755 = vmatprep.subr.mxu0 0.0
        %756 = vmatpush1.msra.mxu0 0.0
        %757 = vmatprep.subr.mxu0 0.0
        %758 = vmatpush1.msra.mxu0 0.0
        %759 = vmatprep.subr.mxu0 0.0
        %760 = vmatpush1.msra.mxu0 0.0
        %761 = vmatprep.subr.mxu0 0.0
        %762 = vmatpush1.msra.mxu0 0.0
        %763 = vmatprep.subr.mxu0 0.0
        %764 = vmatpush1.msra.mxu0 0.0
        %765 = vmatprep.subr.mxu0 0.0
        %766 = vmatpush1.msra.mxu0 0.0
        %767 = vmatprep.subr.mxu0 0.0
        %768 = vmatpush1.msra.mxu0 0.0
        %769 = vmatprep.subr.mxu0 0.0
        %770 = vmatpush1.msra.mxu0 0.0
        %771 = vmatprep.subr.mxu0 0.0
        %772 = vmatpush1.msra.mxu0 0.0
        %773 = vmatprep.subr.mxu0 0.0
        %774 = vmatpush1.msra.mxu0 0.0
        %775 = vmatprep.subr.mxu0 0.0
        %776 = vmatpush1.msra.mxu0 0.0
        %777 = vmatprep.subr.mxu0 0.0
        %778 = vmatpush1.msra.mxu0 0.0
        %779 = vmatprep.subr.mxu0 0.0
        %780 = vmatpush1.msra.mxu0 0.0
        %781 = vmatprep.subr.mxu0 0.0
        %782 = vmatpush1.msra.mxu0 0.0
        %783 = vmatprep.subr.mxu0 0.0
        %784 = vmatpush1.msra.mxu0 0.0
        %785 = vmatprep.subr.mxu0 0.0
        %786 = vmatpush1.msra.mxu0 0.0
        %787 = vmatprep.subr.mxu0 0.0
        %788 = vmatpush1.msra.mxu0 0.0
        %789 = vmatprep.subr.mxu0 0.0
        %790 = vmatpush1.msra.mxu0 0.0
        %791 = vmatprep.subr.mxu0 0.0
        %792 = vmatpush1.msra.mxu0 0.0
        %793 = vmatprep.subr.mxu0 0.0
        %794 = vmatpush1.msra.mxu0 0.0
        %795 = vmatprep.mubr.f32.mxu0 0.0
        %796 = vmatmul.mubr.f32.gmra.mrb[0].mxu0 %v729
        %v797 = vpop.f32.mrb[0].mxu0
        %v798 = vadd.f32 0.0, %v797
        %v799 = vpop.f32.mrb[0].mxu0
        %800 = vdwg.mxu0
        %vm801 = vcmp.gt.f32.partialorder %v798, 0.0
        %v802 = vsel %vm801, %v798, 1.0
        %v803 = vmul.f32 %v282, 0.2
        %v804 = vmul.f32 %v803, %v727
        %v805 = vsub.f32 0.0, %v376
        %v806 = vsub.f32 0.0, %v378
        %v807 = vsub.f32 0.0, %v380
        %v808 = vsub.f32 0.0, %v382
        %v809 = vsub.f32 0.0, %v384
        %v810 = vsub.f32 0.0, %v386
        %v811 = vsub.f32 0.0, %v388
        %v812 = vsub.f32 0.0, %v390
        %v821 = vlaneseq
        %v822 = vshrl.u32 %v821, 7
        %v823 = vsub.s32 %v286, %v822
        %v824 = vrot.slane %v805, %v823
        %v825 = vlaneseq
        %v826 = vshrl.u32 %v825, 7
        %v827 = vsub.s32 %v286, %v826
        %v828 = vrot.slane %v806, %v827
        %v829 = vlaneseq
        %v830 = vshrl.u32 %v829, 7
        %v831 = vsub.s32 %v286, %v830
        %v832 = vrot.slane %v807, %v831
        %v833 = vlaneseq
        %v834 = vshrl.u32 %v833, 7
        %v835 = vsub.s32 %v286, %v834
        %v836 = vrot.slane %v808, %v835
        %v837 = vlaneseq
        %v838 = vshrl.u32 %v837, 7
        %v839 = vsub.s32 %v286, %v838
        %v840 = vrot.slane %v809, %v839
        %v841 = vlaneseq
        %v842 = vshrl.u32 %v841, 7
        %v843 = vsub.s32 %v286, %v842
        %v844 = vrot.slane %v810, %v843
        %v845 = vlaneseq
        %v846 = vshrl.u32 %v845, 7
        %v847 = vsub.s32 %v286, %v846
        %v848 = vrot.slane %v811, %v847
        %v849 = vlaneseq
        %v850 = vshrl.u32 %v849, 7
        %v851 = vsub.s32 %v286, %v850
        %v852 = vrot.slane %v812, %v851
        %v853 = vsel %vm714, %v828, %v824
        %v854 = vsel %vm716, %v832, %v853
        %v855 = vsel %vm718, %v836, %v854
        %v856 = vsel %vm720, %v840, %v855
        %v857 = vsel %vm722, %v844, %v856
        %v858 = vsel %vm724, %v848, %v857
        %v859 = vsel %vm726, %v852, %v858
        %v861 = vmul.f32 %v804, %v859
        %v862 = vrcp.pop %v802
        %v863 = vmul.f32 %v861, %v862
        %v864 = vsel %vm279, %v863, 0.0
        %865 = vadd.xlane.f32.xlu0 %v864
        %v866 = vpop.xlane.xlu0 %865
        %v867 = vrot.slane %v866, 4
        %v868 = vadd.f32 %v866, %v867
        %v869 = vrot.slane %v868, 2
        %v870 = vadd.f32 %v868, %v869
        %v871 = vrot.slane %v870, 1
        %v872 = vadd.f32 %v870, %v871
        %s873 = vtos %v872
        %v874 = vstv %s873
        %v875 = vadd.f32 %v874, 0.0
        %876 = vst [vmem:[%s267] sm:$0xff] %v875
        %s877 = sand.u32 %s150, 1
        %s878 = scalar_lea.sflag [#allocation4], %s877
        %s879 = sand.u32 %s150, 1
        %s880 = smul.addr %s879, 8
        %s881 = scalar_lea.vmem [#allocation5], %s880
        // Predicated region
        $region45: #{tpu_custom_call.1} parent=39 // pred_check
          %p882 = pneg %p160
        $region46: #{tpu_custom_call.1} parent=39 // pred_check_branch
          %884 = sbr.rel (%p882) target = $region48
        $region47: #{tpu_custom_call.1} parent=39 // pred_region
          %s886 = ssub.s32 128, 128
          %887 = vsyncadd %s878, %s886
          %s888 = smul.addr %s22, 128
          %s889 = scalar_lea.hbm %s5, %s888
          %s891 = sshll.u32 %s881, 4
          %s892 = int_to_ptr.vmem [resolvable:$true] %s891
          %894 = dma.vmem_to_hbm [thread:$0]  %s892, 128, %s889, %s878
        $region48: #{tpu_custom_call.1} parent=39 // pred_fallthru
          _
      $region40: #{tpu_custom_call.1} parent=5 // pred_fallthru
        _
      %p895 = scmp.le.s32.totalorder 2, %s17
      // Predicated region
      $region49: #{tpu_custom_call.1} parent=5 // pred_check
        %p896 = pneg %p895
      $region50: #{tpu_custom_call.1} parent=5 // pred_check_branch
        %898 = sbr.rel (%p896) target = $region52
      $region51: #{tpu_custom_call.1} parent=5 // pred_region
        %s899 = ssub.s32 %s17, 2
        // Predicated region
        $region53: #{tpu_custom_call.1} parent=51 // pred_check
          %p900 = pneg %p166
        $region54: #{tpu_custom_call.1} parent=51 // pred_check_branch
          %902 = sbr.rel (%p900) target = $region56
        $region55: #{tpu_custom_call.1} parent=51 // pred_region
          %s903 = sand.u32 %s151, 1
          %s904 = scalar_lea.sflag [#allocation4], %s903
          %s905 = sand.u32 %s151, 1
          %s906 = smul.addr %s905, 8
          %s907 = scalar_lea.vmem [#allocation5], %s906
          %908 = dma.done %s904, 128
        $region56: #{tpu_custom_call.1} parent=51 // pred_fallthru
          _
      $region52: #{tpu_custom_call.1} parent=5 // pred_fallthru
        _
    $region6: #{tpu_custom_call.1} parent=1 // loop_footer
      %s21 = sadd.s32 1, %s17
    $region7: #{tpu_custom_call.1} parent=1 // loop_footer_branch
      %16 = sbr.rel target = $region3
    $region8: #{tpu_custom_call.1} parent=1 // loop_exit
      _
    %909 = vsyncpa [#allocation3], 1
    %s910 = scalar_lea.sflag [#allocation3], 1
    %911 = vsyncpa %s910, 1
    %912 = vsyncpa [#allocation4], 1
    %s913 = scalar_lea.sflag [#allocation4], 1
    %914 = vsyncpa %s913, 1

</llo_original>
